<compile_context>
chip_gen: v7x
topology: tpu7x:2x2x1
jax: 0.10.0
libtpu: 0.0.40
codegen_flags: <defaults>
</compile_context>

<pallas_src>
import numpy as np
import jax
import jax.numpy as jnp
from jax.experimental import pallas as pl
from jax.experimental.pallas import tpu as pltpu

LANE = 128  # TPU lane width


# ---------------------------------------------------------------------------
# Pallas kernel
#   x = (z * exp(S(z_<i, c)) + M(z_<i, c)) @ A ,   log|det J| = sum_i S_i
#   out cols [0:K) = x, col K = log|det J|
# ---------------------------------------------------------------------------
def conditional_ar_kernel(z_ref, c_ref, w1z_ref, w1c_ref, b1_ref,
                          w2_ref, b2_ref, aout_ref, ssel_ref, out_ref):
    z = z_ref[...]                                   # (Bb, K)
    c = c_ref[...]                                   # (Bb, Dc)
    K = z_ref.shape[1]
    lane = w2_ref.shape[1] // 2                      # s cols in [0:lane), m cols in [lane:2*lane)

    # Fused first layer of all 2K padded MLPs: one lane-dense GEMM per input operand.
    pre = (jnp.dot(z, w1z_ref[...], preferred_element_type=jnp.float32)
           + jnp.dot(c, w1c_ref[...], preferred_element_type=jnp.float32)
           + b1_ref[...])                            # (Bb, NHp)
    h = jnp.tanh(pre)                                # EUP

    # Second layer of all MLPs as one block-structured GEMM (rank-2 / MXU).
    # s outputs land in lanes [0:K) of the first 128-lane slab, m outputs in lanes
    # [0:K) of the second slab -> S and M are lane-aligned with z (no lane shift).
    o = jnp.dot(h, w2_ref[...],
                preferred_element_type=jnp.float32) + b2_ref[...]   # (Bb, 2*lane)

    S = o[:, :K]                                     # log-scales
    M = o[:, lane:lane + K]                          # shifts

    x_pre = z * jnp.exp(S) + M                       # (Bb, K)

    # Fused lane-dense epilogue:
    #   aout = A zero-padded to 128 lanes (det-1 invertible output mapping),
    #   ssel = one-hot column K -> log|det J| = sum(S) computed on the MXU.
    out_ref[...] = (jnp.dot(x_pre, aout_ref[...], preferred_element_type=jnp.float32)
                    + jnp.dot(S, ssel_ref[...], preferred_element_type=jnp.float32))


# ---------------------------------------------------------------------------
# Wrapper
# ---------------------------------------------------------------------------
def conditional_ar_forward(c, z, packed, *, block_b=None):
    """c: (B, Dc), z: (B, K) float32. Returns (x, log_jac_det) for the reverse=False
    (forward / sampling) branch of ConditionalAutoRegressiveLayer2."""
    B, K = z.shape
    Dc = c.shape[1]
    W1z, W1c, b1, W2b, b2, Aout, Ssel = packed
    NHp = W1z.shape[1]                               # padded fused hidden columns
    W2cols = W2b.shape[1]                            # 2 * LANE
    OUT_W = Aout.shape[1]                            # >= K + 1, multiple of 128

    if block_b is None:
        block_b = min(max(B, 8), 256)
    block_b = ((block_b + 7) // 8) * 8               # sublane-aligned batch tile
    Bp = ((B + block_b - 1) // block_b) * block_b
    if Bp != B:
        z_p = jnp.zeros((Bp, K), z.dtype).at[:B].set(z)
        c_p = jnp.zeros((Bp, Dc), c.dtype).at[:B].set(c)
    else:
        z_p, c_p = z, c
    nb = Bp // block_b

    flops = int(2 * Bp * (K * NHp + Dc * NHp + NHp * W2cols + 2 * K * OUT_W) + 6 * Bp * K)
    transcendentals = int(Bp * NHp + Bp * K)         # tanh + exp
    bytes_accessed = int(4 * (Bp * (K + Dc) + W1z.size + W1c.size + b1.size
                              + W2b.size + b2.size + Aout.size + Ssel.size + Bp * OUT_W))

    out = pl.pallas_call(
        conditional_ar_kernel,
        out_shape=jax.ShapeDtypeStruct((Bp, OUT_W), jnp.float32),
        grid_spec=pltpu.PrefetchScalarGridSpec(
            num_scalar_prefetch=0,
            grid=(nb,),
            in_specs=[
                pl.BlockSpec((block_b, K), lambda b: (b, 0)),        # z (batch-tiled)
                pl.BlockSpec((block_b, Dc), lambda b: (b, 0)),       # c (batch-tiled)
                pl.BlockSpec(tuple(W1z.shape), lambda b: (0, 0)),    # weights: VMEM-resident
                pl.BlockSpec(tuple(W1c.shape), lambda b: (0, 0)),
                pl.BlockSpec(tuple(b1.shape), lambda b: (0, 0)),
                pl.BlockSpec(tuple(W2b.shape), lambda b: (0, 0)),
                pl.BlockSpec(tuple(b2.shape), lambda b: (0, 0)),
                pl.BlockSpec(tuple(Aout.shape), lambda b: (0, 0)),
                pl.BlockSpec(tuple(Ssel.shape), lambda b: (0, 0)),
            ],
            out_specs=pl.BlockSpec((block_b, OUT_W), lambda b: (b, 0)),
        ),
        compiler_params=pltpu.CompilerParams(
            dimension_semantics=("parallel",)),
        cost_estimate=pl.CostEstimate(flops=flops,
                                      transcendentals=transcendentals,
                                      bytes_accessed=bytes_accessed),
    )(z_p, c_p, W1z, W1c, b1, W2b, b2, Aout, Ssel)

    x = out[:B, :K]
    ljd = out[:B, K]
    return x, ljd


# ---------------------------------------------------------------------------
# Deterministic parameter construction / packing
#   net k (for k in [0, K)):  Linear(k+Dc -> k+Dc), Tanh, Linear(k+Dc -> 1)
#   input to net k: concat(z[:, :k], c)
# ---------------------------------------------------------------------------
def make_params(output_dim, input_dim, seed=42):
    K, Dc = output_dim, input_dim
    assert K + 1 <= LANE, "output_dim must fit in one 128-lane slab for this packing"
    H = K + Dc                                    # padded hidden width (net k uses k + Dc of it)
    NH = 2 * K * H                                # fused s||m hidden columns
    NHp = ((NH + LANE - 1) // LANE) * LANE        # lane-dense padded hidden width
    W2cols = 2 * LANE                             # s -> lanes [0:K), m -> lanes [LANE:LANE+K)
    OUT_W = max(LANE, ((K + 1 + LANE - 1) // LANE) * LANE)

    W1z = np.zeros((K, NHp), np.float32)          # rows fed by z features
    W1c = np.zeros((Dc, NHp), np.float32)         # rows fed by the condition c
    b1 = np.zeros((1, NHp), np.float32)
    W2b = np.zeros((NHp, W2cols), np.float32)     # block-structured second layer
    b2 = np.zeros((1, W2cols), np.float32)

    rng = np.random.RandomState(seed)
    raw_s, raw_m = [], []
    for k in range(K):
        hk = k + Dc
        for raw, col in ((raw_s, k), (raw_m, LANE + k)):
            w1 = (rng.standard_normal((hk, hk)) * 0.3).astype(np.float32)
            bb1 = (rng.standard_normal((hk,)) * 0.1).astype(np.float32)
            w2 = (rng.standard_normal((hk,)) * 0.3).astype(np.float32)
            bb2 = np.float32(rng.standard_normal() * 0.1)
            off = (len(raw_s) + len(raw_m) - 1) * H   # sequential packing of hidden blocks
            W1z[:k, off:off + hk] = w1[:k, :]     # first k in-features come from z[:, :k]
            W1c[:, off:off + hk] = w1[k:, :]      # last Dc in-features come from c
            b1[0, off:off + hk] = bb1
            W2b[off:off + hk, col] = w2
            b2[0, col] = bb2
            raw.append((w1, bb1, w2, bb2))

    # Determinant-1 invertible output mapping: A = L @ U with unit diagonals.
    L = np.tril((rng.standard_normal((K, K)) * 0.3).astype(np.float32), -1) \
        + np.eye(K, dtype=np.float32)
    U = np.triu((rng.standard_normal((K, K)) * 0.3).astype(np.float32), 1) \
        + np.eye(K, dtype=np.float32)
    A = (L @ U).astype(np.float32)

    # Epilogue matrices: Aout maps x_pre -> x into lanes [0:K); Ssel puts sum(S) in lane K.
    Aout = np.zeros((K, OUT_W), np.float32)
    Aout[:, :K] = A
    Ssel = np.zeros((K, OUT_W), np.float32)
    Ssel[:, K] = 1.0

    packed = tuple(jnp.asarray(a) for a in (W1z, W1c, b1, W2b, b2, Aout, Ssel))
    return packed, (raw_s, raw_m, A)


# ---------------------------------------------------------------------------
# Pure numpy reference (mirrors the torch forward, reverse=False branch)
# ---------------------------------------------------------------------------
def reference_forward(z, c, raw_s, raw_m, A):
    B, K = z.shape
    x = np.zeros((B, K), np.float32)
    ljd = np.zeros(B, np.float32)
    for i in range(K):
        inp = np.concatenate([z[:, :i], c], axis=1).astype(np.float32)
        w1, b1, w2, b2 = raw_s[i]
        s = np.tanh(inp @ w1 + b1) @ w2 + b2
        w1m, b1m, w2m, b2m = raw_m[i]
        m = np.tanh(inp @ w1m + b1m) @ w2m + b2m
        x[:, i] = z[:, i] * np.exp(s) + m
        ljd += s
    return x @ A, ljd


if __name__ == "__main__":
    batch, input_dim, output_dim = 8, 4, 8
    key = jax.random.PRNGKey(0)
    kz, kc = jax.random.split(key)
    z = jax.random.normal(kz, (batch, output_dim), jnp.float32)
    c = jax.random.normal(kc, (batch, input_dim), jnp.float32)

    packed, (raw_s, raw_m, A) = make_params(output_dim, input_dim, seed=42)

    x, ljd = conditional_ar_forward(c, z, packed)
    jax.block_until_ready((x, ljd))

    x_ref, ljd_ref = reference_forward(np.asarray(z), np.asarray(c), raw_s, raw_m, A)
    assert np.allclose(np.asarray(x), x_ref, atol=1e-4, rtol=1e-4), "x mismatch"
    assert np.allclose(np.asarray(ljd), ljd_ref, atol=1e-4, rtol=1e-4), "log_jac_det mismatch"
    print("KERNEL_OK")
</pallas_src>

<mosaic_0001>
module attributes {stable_mosaic.version = 11 : i64} {
  func.func @conditional_ar_kernel(%arg0: i32, %arg1: memref<8x8xf32, #tpu.memory_space<vmem>>, %arg2: memref<8x4xf32, #tpu.memory_space<vmem>>, %arg3: memref<8x256xf32, #tpu.memory_space<vmem>>, %arg4: memref<4x256xf32, #tpu.memory_space<vmem>>, %arg5: memref<1x256xf32, #tpu.memory_space<vmem>>, %arg6: memref<256x256xf32, #tpu.memory_space<vmem>>, %arg7: memref<1x256xf32, #tpu.memory_space<vmem>>, %arg8: memref<8x128xf32, #tpu.memory_space<vmem>>, %arg9: memref<8x128xf32, #tpu.memory_space<vmem>>, %arg10: memref<8x128xf32, #tpu.memory_space<vmem>>) attributes {dimension_semantics = [#tpu.dimension_semantics<parallel>], iteration_bounds = array<i64: 1>, scalar_prefetch = 0 : i64, scratch_operands = 0 : i64, tpu.core_type = #tpu.core_type<tc>, window_params = [{transform_indices = @transform_0, window_bounds = array<i64: 8, 8>}, {transform_indices = @transform_1, window_bounds = array<i64: 8, 4>}, {pipeline_mode = #tpu.pipeline_mode<synchronous>, transform_indices = @transform_2, window_bounds = array<i64: 8, 256>}, {pipeline_mode = #tpu.pipeline_mode<synchronous>, transform_indices = @transform_3, window_bounds = array<i64: 4, 256>}, {pipeline_mode = #tpu.pipeline_mode<synchronous>, transform_indices = @transform_4, window_bounds = array<i64: 1, 256>}, {pipeline_mode = #tpu.pipeline_mode<synchronous>, transform_indices = @transform_5, window_bounds = array<i64: 256, 256>}, {pipeline_mode = #tpu.pipeline_mode<synchronous>, transform_indices = @transform_6, window_bounds = array<i64: 1, 256>}, {pipeline_mode = #tpu.pipeline_mode<synchronous>, transform_indices = @transform_7, window_bounds = array<i64: 8, 128>}, {pipeline_mode = #tpu.pipeline_mode<synchronous>, transform_indices = @transform_8, window_bounds = array<i64: 8, 128>}, {transform_indices = @transform_9, window_bounds = array<i64: 8, 128>}]} {
    %c0 = arith.constant 0 : index
    %c0_0 = arith.constant 0 : index
    %0 = vector.load %arg1[%c0, %c0_0] : memref<8x8xf32, #tpu.memory_space<vmem>>, vector<8x8xf32>
    %c0_1 = arith.constant 0 : index
    %c0_2 = arith.constant 0 : index
    %1 = vector.load %arg2[%c0_1, %c0_2] : memref<8x4xf32, #tpu.memory_space<vmem>>, vector<8x4xf32>
    %c0_3 = arith.constant 0 : index
    %c0_4 = arith.constant 0 : index
    %2 = vector.load %arg3[%c0_3, %c0_4] : memref<8x256xf32, #tpu.memory_space<vmem>>, vector<8x256xf32>
    %cst = arith.constant dense<0.000000e+00> : vector<8x256xf32>
    %3 = tpu.matmul %0, %2, %cst {dimension_numbers = #tpu.dot_dimension_numbers<[1], [0], [0], [1], [0, 0, 1, 1], [], []>} : vector<8x8xf32>, vector<8x256xf32>, vector<8x256xf32> -> vector<8x256xf32>
    %c0_5 = arith.constant 0 : index
    %c0_6 = arith.constant 0 : index
    %4 = vector.load %arg4[%c0_5, %c0_6] : memref<4x256xf32, #tpu.memory_space<vmem>>, vector<4x256xf32>
    %cst_7 = arith.constant dense<0.000000e+00> : vector<8x256xf32>
    %5 = tpu.matmul %1, %4, %cst_7 {dimension_numbers = #tpu.dot_dimension_numbers<[1], [0], [0], [1], [0, 0, 1, 1], [], []>} : vector<8x4xf32>, vector<4x256xf32>, vector<8x256xf32> -> vector<8x256xf32>
    %6 = arith.addf %3, %5 : vector<8x256xf32>
    %c0_8 = arith.constant 0 : index
    %c0_9 = arith.constant 0 : index
    %7 = vector.load %arg5[%c0_8, %c0_9] : memref<1x256xf32, #tpu.memory_space<vmem>>, vector<1x256xf32>
    %8 = vector.broadcast %7 : vector<1x256xf32> to vector<8x256xf32>
    %9 = arith.addf %6, %8 : vector<8x256xf32>
    %10 = math.tanh %9 : vector<8x256xf32>
    %c0_10 = arith.constant 0 : index
    %c0_11 = arith.constant 0 : index
    %11 = vector.load %arg6[%c0_10, %c0_11] : memref<256x256xf32, #tpu.memory_space<vmem>>, vector<256x256xf32>
    %cst_12 = arith.constant dense<0.000000e+00> : vector<8x256xf32>
    %12 = tpu.matmul %10, %11, %cst_12 {dimension_numbers = #tpu.dot_dimension_numbers<[1], [0], [0], [1], [0, 0, 1, 1], [], []>} : vector<8x256xf32>, vector<256x256xf32>, vector<8x256xf32> -> vector<8x256xf32>
    %c0_13 = arith.constant 0 : index
    %c0_14 = arith.constant 0 : index
    %13 = vector.load %arg7[%c0_13, %c0_14] : memref<1x256xf32, #tpu.memory_space<vmem>>, vector<1x256xf32>
    %14 = vector.broadcast %13 : vector<1x256xf32> to vector<8x256xf32>
    %15 = arith.addf %12, %14 : vector<8x256xf32>
    %16 = vector.extract_strided_slice %15 {offsets = [0, 0], sizes = [8, 8], strides = [1, 1]} : vector<8x256xf32> to vector<8x8xf32>
    %17 = vector.extract_strided_slice %15 {offsets = [0, 128], sizes = [8, 8], strides = [1, 1]} : vector<8x256xf32> to vector<8x8xf32>
    %18 = math.exp %16 : vector<8x8xf32>
    %19 = arith.mulf %0, %18 : vector<8x8xf32>
    %20 = arith.addf %19, %17 : vector<8x8xf32>
    %c0_15 = arith.constant 0 : index
    %c0_16 = arith.constant 0 : index
    %21 = vector.load %arg8[%c0_15, %c0_16] : memref<8x128xf32, #tpu.memory_space<vmem>>, vector<8x128xf32>
    %cst_17 = arith.constant dense<0.000000e+00> : vector<8x128xf32>
    %22 = tpu.matmul %20, %21, %cst_17 {dimension_numbers = #tpu.dot_dimension_numbers<[1], [0], [0], [1], [0, 0, 1, 1], [], []>} : vector<8x8xf32>, vector<8x128xf32>, vector<8x128xf32> -> vector<8x128xf32>
    %c0_18 = arith.constant 0 : index
    %c0_19 = arith.constant 0 : index
    %23 = vector.load %arg9[%c0_18, %c0_19] : memref<8x128xf32, #tpu.memory_space<vmem>>, vector<8x128xf32>
    %cst_20 = arith.constant dense<0.000000e+00> : vector<8x128xf32>
    %24 = tpu.matmul %16, %23, %cst_20 {dimension_numbers = #tpu.dot_dimension_numbers<[1], [0], [0], [1], [0, 0, 1, 1], [], []>} : vector<8x8xf32>, vector<8x128xf32>, vector<8x128xf32> -> vector<8x128xf32>
    %25 = arith.addf %22, %24 : vector<8x128xf32>
    %c0_21 = arith.constant 0 : index
    %c0_22 = arith.constant 0 : index
    %26 = vector.load %arg10[%c0_21, %c0_22] : memref<8x128xf32, #tpu.memory_space<vmem>>, vector<8x128xf32>
    tpu.vector_store %arg10[%c0_21, %c0_22], %25 {strides = array<i32>} : memref<8x128xf32, #tpu.memory_space<vmem>>, vector<8x128xf32>,
    return
  }
  func.func @transform_0(%arg0: i32) -> (i32, i32) {
    %c0_i32 = arith.constant 0 : i32
    %c0_i32_0 = arith.constant 0 : i32
    return %arg0, %c0_i32 : i32, i32
  }
  func.func @transform_1(%arg0: i32) -> (i32, i32) {
    %c0_i32 = arith.constant 0 : i32
    %c0_i32_0 = arith.constant 0 : i32
    return %arg0, %c0_i32 : i32, i32
  }
  func.func @transform_2(%arg0: i32) -> (i32, i32) {
    %c0_i32 = arith.constant 0 : i32
    %c0_i32_0 = arith.constant 0 : i32
    %c0_i32_1 = arith.constant 0 : i32
    return %c0_i32, %c0_i32_0 : i32, i32
  }
  func.func @transform_3(%arg0: i32) -> (i32, i32) {
    %c0_i32 = arith.constant 0 : i32
    %c0_i32_0 = arith.constant 0 : i32
    %c0_i32_1 = arith.constant 0 : i32
    return %c0_i32, %c0_i32_0 : i32, i32
  }
  func.func @transform_4(%arg0: i32) -> (i32, i32) {
    %c0_i32 = arith.constant 0 : i32
    %c0_i32_0 = arith.constant 0 : i32
    %c0_i32_1 = arith.constant 0 : i32
    return %c0_i32, %c0_i32_0 : i32, i32
  }
  func.func @transform_5(%arg0: i32) -> (i32, i32) {
    %c0_i32 = arith.constant 0 : i32
    %c0_i32_0 = arith.constant 0 : i32
    %c0_i32_1 = arith.constant 0 : i32
    return %c0_i32, %c0_i32_0 : i32, i32
  }
  func.func @transform_6(%arg0: i32) -> (i32, i32) {
    %c0_i32 = arith.constant 0 : i32
    %c0_i32_0 = arith.constant 0 : i32
    %c0_i32_1 = arith.constant 0 : i32
    return %c0_i32, %c0_i32_0 : i32, i32
  }
  func.func @transform_7(%arg0: i32) -> (i32, i32) {
    %c0_i32 = arith.constant 0 : i32
    %c0_i32_0 = arith.constant 0 : i32
    %c0_i32_1 = arith.constant 0 : i32
    return %c0_i32, %c0_i32_0 : i32, i32
  }
  func.func @transform_8(%arg0: i32) -> (i32, i32) {
    %c0_i32 = arith.constant 0 : i32
    %c0_i32_0 = arith.constant 0 : i32
    %c0_i32_1 = arith.constant 0 : i32
    return %c0_i32, %c0_i32_0 : i32, i32
  }
  func.func @transform_9(%arg0: i32) -> (i32, i32) {
    %c0_i32 = arith.constant 0 : i32
    %c0_i32_0 = arith.constant 0 : i32
    return %arg0, %c0_i32 : i32, i32
  }
}

</mosaic_0001>

<llo_original>
// kernel: tpu_custom_call.1
$region0: #{tpu_custom_call.1}
  #allocation0 [shape = 'u32[]', space=smem, size = 0x4, offset = 0x4, fixed_abs, tag = 'smem constant byte address 0x4 - core index']
  #allocation1 [shape = 'u32[144,128]{1,0:T(1,128)}', space=vmem, size = 0x12000, scoped, tag = 'internal scratch']
  %s0 = inlined_call_operand.hbm [shape: f32[8,8], index: 0, kind: input, shape index: {}]
  %s1 = inlined_call_operand.vmem [shape: f32[8,4], index: 1, kind: input, shape index: {}]
  %s2 = inlined_call_operand.vmem [shape: f32[8,256], index: 2, kind: input, shape index: {}]
  %s3 = inlined_call_operand.hbm [shape: f32[4,256], index: 3, kind: input, shape index: {}]
  %s4 = inlined_call_operand.vmem [shape: f32[1,256], index: 4, kind: input, shape index: {}]
  %s5 = inlined_call_operand.hbm [shape: f32[256,256], index: 5, kind: input, shape index: {}]
  %s6 = inlined_call_operand.hbm [shape: f32[1,256], index: 6, kind: input, shape index: {}]
  %s7 = inlined_call_operand.vmem [shape: f32[8,128], index: 7, kind: input, shape index: {}]
  %s8 = inlined_call_operand.vmem [shape: f32[8,128], index: 8, kind: input, shape index: {}]
  %s9 = inlined_call_operand.hbm [shape: f32[8,128], index: 9, kind: output, shape index: {}]
  %s10 = sld [smem:[#allocation0]]
  $region62: #{tpu_custom_call.1} parent=0
    _
  %s12 = ssub.s32 1, %s10
  %s13 = scalar_select 0, %s12, %s10
  $region1: #{tpu_custom_call.1} parent=0
    #allocation2 [shape = 'u8[4096]{0}', space=vmem, size = 0x1000, scoped, tag = 'input window, operand 0, single buffered']
    #allocation3 [shape = 's32[1]{0}', space=sflag, size = 0x4, scoped, tag = 'scoped memory for tpu_custom_call.1']
    #allocation4 [shape = 's32[1]{0}', space=sflag, size = 0x4, scoped, tag = 'scoped memory for tpu_custom_call.1']
    #allocation5 [shape = 'u8[4096]{0}', space=vmem, size = 0x1000, scoped, tag = 'input window, operand 3, single buffered']
    #allocation6 [shape = 's32[1]{0}', space=sflag, size = 0x4, scoped, tag = 'scoped memory for tpu_custom_call.1']
    #allocation7 [shape = 'u8[262144]{0}', space=vmem, size = 0x40000, scoped, tag = 'input window, operand 5, single buffered']
    #allocation8 [shape = 'u8[1024]{0}', space=vmem, size = 0x400, scoped, tag = 'input window, operand 6, single buffered']
    #allocation9 [shape = 's32[1]{0}', space=sflag, size = 0x4, scoped, tag = 'scoped memory for tpu_custom_call.1']
    #allocation10 [shape = 'u8[4096]{0}', space=vmem, size = 0x1000, scoped, tag = 'output window, operand 0, single buffered']
    %14 = vsyncpa [#allocation3], 0
    %15 = vsyncpa [#allocation6], 0
    %16 = vsyncpa [#allocation9], 0
    %17 = vsyncpa [#allocation4], 0
    // Predicated region
    $region2: #{tpu_custom_call.1} parent=1 // pred_check
      _
    $region3: #{tpu_custom_call.1} parent=1 // pred_check_branch
      %19 = sbr.rel (0) target = $region5
    $region4: #{tpu_custom_call.1} parent=1 // pred_region
      %s21 = ssub.s32 128, 128
      %22 = vsyncadd [#allocation3], %s21
      %s24 = sshll.u32 [#allocation2], 4
      %s25 = int_to_ptr.vmem [resolvable:$true] %s24
      %27 = dma.hbm_to_vmem [thread:$0]  %s0, 128, %s25, [#allocation3]
    $region5: #{tpu_custom_call.1} parent=1 // pred_fallthru
      _
    // Predicated region
    $region6: #{tpu_custom_call.1} parent=1 // pred_check
      _
    $region7: #{tpu_custom_call.1} parent=1 // pred_check_branch
      %29 = sbr.rel (0) target = $region9
    $region8: #{tpu_custom_call.1} parent=1 // pred_region
      _
    $region9: #{tpu_custom_call.1} parent=1 // pred_fallthru
      _
    // Predicated region
    $region10: #{tpu_custom_call.1} parent=1 // pred_check
      _
    $region11: #{tpu_custom_call.1} parent=1 // pred_check_branch
      %31 = sbr.rel (0) target = $region13
    $region12: #{tpu_custom_call.1} parent=1 // pred_region
      _
    $region13: #{tpu_custom_call.1} parent=1 // pred_fallthru
      _
    // Predicated region
    $region14: #{tpu_custom_call.1} parent=1 // pred_check
      _
    $region15: #{tpu_custom_call.1} parent=1 // pred_check_branch
      %33 = sbr.rel (0) target = $region17
    $region16: #{tpu_custom_call.1} parent=1 // pred_region
      %s35 = ssub.s32 128, 128
      %36 = vsyncadd [#allocation6], %s35
      %s38 = sshll.u32 [#allocation5], 4
      %s39 = int_to_ptr.vmem [resolvable:$true] %s38
      %41 = dma.hbm_to_vmem [thread:$0]  %s3, 128, %s39, [#allocation6]
    $region17: #{tpu_custom_call.1} parent=1 // pred_fallthru
      _
    // Predicated region
    $region18: #{tpu_custom_call.1} parent=1 // pred_check
      _
    $region19: #{tpu_custom_call.1} parent=1 // pred_check_branch
      %43 = sbr.rel (0) target = $region21
    $region20: #{tpu_custom_call.1} parent=1 // pred_region
      _
    $region21: #{tpu_custom_call.1} parent=1 // pred_fallthru
      _
    // Predicated region
    $region22: #{tpu_custom_call.1} parent=1 // pred_check
      _
    $region23: #{tpu_custom_call.1} parent=1 // pred_check_branch
      %45 = sbr.rel (0) target = $region25
    $region24: #{tpu_custom_call.1} parent=1 // pred_region
      %s47 = ssub.s32 8192, 8192
      %48 = vsyncadd [#allocation6], %s47
      %s49 = sshll.u32 [#allocation7], 4
      %s50 = int_to_ptr.vmem [resolvable:$true] %s49
      %55 = dma.hbm_to_vmem [thread:$0]  %s5, 8192, %s50, [#allocation6], 256, 256, 16
    $region25: #{tpu_custom_call.1} parent=1 // pred_fallthru
      _
    // Predicated region
    $region26: #{tpu_custom_call.1} parent=1 // pred_check
      _
    $region27: #{tpu_custom_call.1} parent=1 // pred_check_branch
      %57 = sbr.rel (0) target = $region29
    $region28: #{tpu_custom_call.1} parent=1 // pred_region
      %s59 = ssub.s32 32, 32
      %60 = vsyncadd [#allocation9], %s59
      %s62 = sshll.u32 [#allocation8], 4
      %s63 = int_to_ptr.vmem [resolvable:$true] %s62
      %65 = dma.hbm_to_vmem [thread:$0]  %s6, 32, %s63, [#allocation9]
    $region29: #{tpu_custom_call.1} parent=1 // pred_fallthru
      _
    // Predicated region
    $region30: #{tpu_custom_call.1} parent=1 // pred_check
      _
    $region31: #{tpu_custom_call.1} parent=1 // pred_check_branch
      %67 = sbr.rel (0) target = $region33
    $region32: #{tpu_custom_call.1} parent=1 // pred_region
      _
    $region33: #{tpu_custom_call.1} parent=1 // pred_fallthru
      _
    // Predicated region
    $region34: #{tpu_custom_call.1} parent=1 // pred_check
      _
    $region35: #{tpu_custom_call.1} parent=1 // pred_check_branch
      %69 = sbr.rel (0) target = $region37
    $region36: #{tpu_custom_call.1} parent=1 // pred_region
      _
    $region37: #{tpu_custom_call.1} parent=1 // pred_fallthru
      _
    // Predicated region
    $region38: #{tpu_custom_call.1} parent=1 // pred_check
      _
    $region39: #{tpu_custom_call.1} parent=1 // pred_check_branch
      %71 = sbr.rel (0) target = $region41
    $region40: #{tpu_custom_call.1} parent=1 // pred_region
      %72 = dma.done [#allocation3], 128
    $region41: #{tpu_custom_call.1} parent=1 // pred_fallthru
      _
    // Predicated region
    $region42: #{tpu_custom_call.1} parent=1 // pred_check
      _
    $region43: #{tpu_custom_call.1} parent=1 // pred_check_branch
      %74 = sbr.rel (0) target = $region45
    $region44: #{tpu_custom_call.1} parent=1 // pred_region
      %75 = dma.done [#allocation6], 128
    $region45: #{tpu_custom_call.1} parent=1 // pred_fallthru
      _
    // Predicated region
    $region46: #{tpu_custom_call.1} parent=1 // pred_check
      _
    $region47: #{tpu_custom_call.1} parent=1 // pred_check_branch
      %77 = sbr.rel (0) target = $region49
    $region48: #{tpu_custom_call.1} parent=1 // pred_region
      %78 = dma.done [#allocation6], 8192
    $region49: #{tpu_custom_call.1} parent=1 // pred_fallthru
      _
    // Predicated region
    $region50: #{tpu_custom_call.1} parent=1 // pred_check
      _
    $region51: #{tpu_custom_call.1} parent=1 // pred_check_branch
      %80 = sbr.rel (0) target = $region53
    $region52: #{tpu_custom_call.1} parent=1 // pred_region
      %81 = dma.done [#allocation9], 32
    $region53: #{tpu_custom_call.1} parent=1 // pred_fallthru
      _
    %v82 = vld [vmem:[#allocation2] sm:$0xff]
    %v83 = vld [vmem:[%s1] sm:$0xff]
    %v84 = vld [vmem:[%s2] sm:$0xff]
    %v85 = vld [vmem:[%s2 + $0x8] sm:$0xff]
    %v86 = vld [vmem:[#allocation5] sm:$0xff]
    %v88 = vcombine.high %v86, %v86
    %vm89 = vcmask 31744
    %v91 = vsel %vm89, %v83, 0
    %vm93 = vcmask 1043456
    %v94 = vsel %vm93, %v86, 0
    %v96 = vsel %vm93, %v88, 0
    %98 = vmatprep.subr.mxu0 %v96
    %99 = vmatpush1.msra.mxu0 %v94
    %100 = vmatprep.subr.mxu0 0.0
    %101 = vmatpush1.msra.mxu0 0.0
    %102 = vmatprep.subr.mxu0 0.0
    %103 = vmatpush1.msra.mxu0 0.0
    %104 = vmatprep.subr.mxu0 0.0
    %105 = vmatpush1.msra.mxu0 0.0
    %106 = vmatprep.subr.mxu0 0.0
    %107 = vmatpush1.msra.mxu0 0.0
    %108 = vmatprep.subr.mxu0 0.0
    %109 = vmatpush1.msra.mxu0 0.0
    %110 = vmatprep.subr.mxu0 0.0
    %111 = vmatpush1.msra.mxu0 0.0
    %112 = vmatprep.subr.mxu0 0.0
    %113 = vmatpush1.msra.mxu0 0.0
    %114 = vmatprep.subr.mxu0 0.0
    %115 = vmatpush1.msra.mxu0 0.0
    %116 = vmatprep.subr.mxu0 0.0
    %117 = vmatpush1.msra.mxu0 0.0
    %118 = vmatprep.subr.mxu0 0.0
    %119 = vmatpush1.msra.mxu0 0.0
    %120 = vmatprep.subr.mxu0 0.0
    %121 = vmatpush1.msra.mxu0 0.0
    %122 = vmatprep.subr.mxu0 0.0
    %123 = vmatpush1.msra.mxu0 0.0
    %124 = vmatprep.subr.mxu0 0.0
    %125 = vmatpush1.msra.mxu0 0.0
    %126 = vmatprep.subr.mxu0 0.0
    %127 = vmatpush1.msra.mxu0 0.0
    %128 = vmatprep.subr.mxu0 0.0
    %129 = vmatpush1.msra.mxu0 0.0
    %130 = vmatprep.subr.mxu0 0.0
    %131 = vmatpush1.msra.mxu0 0.0
    %132 = vmatprep.subr.mxu0 0.0
    %133 = vmatpush1.msra.mxu0 0.0
    %134 = vmatprep.subr.mxu0 0.0
    %135 = vmatpush1.msra.mxu0 0.0
    %136 = vmatprep.subr.mxu0 0.0
    %137 = vmatpush1.msra.mxu0 0.0
    %138 = vmatprep.subr.mxu0 0.0
    %139 = vmatpush1.msra.mxu0 0.0
    %140 = vmatprep.subr.mxu0 0.0
    %141 = vmatpush1.msra.mxu0 0.0
    %142 = vmatprep.subr.mxu0 0.0
    %143 = vmatpush1.msra.mxu0 0.0
    %144 = vmatprep.subr.mxu0 0.0
    %145 = vmatpush1.msra.mxu0 0.0
    %146 = vmatprep.subr.mxu0 0.0
    %147 = vmatpush1.msra.mxu0 0.0
    %148 = vmatprep.subr.mxu0 0.0
    %149 = vmatpush1.msra.mxu0 0.0
    %150 = vmatprep.subr.mxu0 0.0
    %151 = vmatpush1.msra.mxu0 0.0
    %152 = vmatprep.subr.mxu0 0.0
    %153 = vmatpush1.msra.mxu0 0.0
    %154 = vmatprep.subr.mxu0 0.0
    %155 = vmatpush1.msra.mxu0 0.0
    %156 = vmatprep.subr.mxu0 0.0
    %157 = vmatpush1.msra.mxu0 0.0
    %158 = vmatprep.subr.mxu0 0.0
    %159 = vmatpush1.msra.mxu0 0.0
    %160 = vmatprep.subr.mxu0 0.0
    %161 = vmatpush1.msra.mxu0 0.0
    %162 = vmatprep.mubr.f32.mxu0 0.0
    %163 = vmatmul.mubr.f32.gmra.mrb[0].mxu0 %v91
    %v164 = vpop.f32.mrb[0].mxu0
    %v165 = vadd.f32 0.0, %v164
    %v166 = vpop.f32.mrb[0].mxu0
    %v167 = vadd.f32 0.0, %v166
    %168 = vdwg.mxu0
    %vm169 = vcmask 64512
    %v171 = vsel %vm169, %v82, 0
    %173 = vmatprep.subr.mxu0 %v85
    %174 = vmatpush1.msra.mxu0 %v84
    %175 = vmatprep.subr.mxu0 0.0
    %176 = vmatpush1.msra.mxu0 0.0
    %177 = vmatprep.subr.mxu0 0.0
    %178 = vmatpush1.msra.mxu0 0.0
    %179 = vmatprep.subr.mxu0 0.0
    %180 = vmatpush1.msra.mxu0 0.0
    %181 = vmatprep.subr.mxu0 0.0
    %182 = vmatpush1.msra.mxu0 0.0
    %183 = vmatprep.subr.mxu0 0.0
    %184 = vmatpush1.msra.mxu0 0.0
    %185 = vmatprep.subr.mxu0 0.0
    %186 = vmatpush1.msra.mxu0 0.0
    %187 = vmatprep.subr.mxu0 0.0
    %188 = vmatpush1.msra.mxu0 0.0
    %189 = vmatprep.subr.mxu0 0.0
    %190 = vmatpush1.msra.mxu0 0.0
    %191 = vmatprep.subr.mxu0 0.0
    %192 = vmatpush1.msra.mxu0 0.0
    %193 = vmatprep.subr.mxu0 0.0
    %194 = vmatpush1.msra.mxu0 0.0
    %195 = vmatprep.subr.mxu0 0.0
    %196 = vmatpush1.msra.mxu0 0.0
    %197 = vmatprep.subr.mxu0 0.0
    %198 = vmatpush1.msra.mxu0 0.0
    %199 = vmatprep.subr.mxu0 0.0
    %200 = vmatpush1.msra.mxu0 0.0
    %201 = vmatprep.subr.mxu0 0.0
    %202 = vmatpush1.msra.mxu0 0.0
    %203 = vmatprep.subr.mxu0 0.0
    %204 = vmatpush1.msra.mxu0 0.0
    %205 = vmatprep.subr.mxu0 0.0
    %206 = vmatpush1.msra.mxu0 0.0
    %207 = vmatprep.subr.mxu0 0.0
    %208 = vmatpush1.msra.mxu0 0.0
    %209 = vmatprep.subr.mxu0 0.0
    %210 = vmatpush1.msra.mxu0 0.0
    %211 = vmatprep.subr.mxu0 0.0
    %212 = vmatpush1.msra.mxu0 0.0
    %213 = vmatprep.subr.mxu0 0.0
    %214 = vmatpush1.msra.mxu0 0.0
    %215 = vmatprep.subr.mxu0 0.0
    %216 = vmatpush1.msra.mxu0 0.0
    %217 = vmatprep.subr.mxu0 0.0
    %218 = vmatpush1.msra.mxu0 0.0
    %219 = vmatprep.subr.mxu0 0.0
    %220 = vmatpush1.msra.mxu0 0.0
    %221 = vmatprep.subr.mxu0 0.0
    %222 = vmatpush1.msra.mxu0 0.0
    %223 = vmatprep.subr.mxu0 0.0
    %224 = vmatpush1.msra.mxu0 0.0
    %225 = vmatprep.subr.mxu0 0.0
    %226 = vmatpush1.msra.mxu0 0.0
    %227 = vmatprep.subr.mxu0 0.0
    %228 = vmatpush1.msra.mxu0 0.0
    %229 = vmatprep.subr.mxu0 0.0
    %230 = vmatpush1.msra.mxu0 0.0
    %231 = vmatprep.subr.mxu0 0.0
    %232 = vmatpush1.msra.mxu0 0.0
    %233 = vmatprep.subr.mxu0 0.0
    %234 = vmatpush1.msra.mxu0 0.0
    %235 = vmatprep.subr.mxu0 0.0
    %236 = vmatpush1.msra.mxu0 0.0
    %237 = vmatprep.mubr.f32.mxu0 0.0
    %238 = vmatmul.mubr.f32.gmra.mrb[0].mxu0 %v171
    %v239 = vpop.f32.mrb[0].mxu0
    %v240 = vadd.f32 %v165, %v239
    %v241 = vpop.f32.mrb[0].mxu0
    %v242 = vadd.f32 %v167, %v241
    %243 = vdwg.mxu0
    %v244 = vld [vmem:[%s4] sm:$0x3]
    %v246 = vlaneseq
    %v247 = vshrl.u32 %v246, 7
    %v248 = vsub.s32 0, %v247
    %v249 = vrot.slane %v244, %v248
    %v250 = vlaneseq
    %v251 = vshrl.u32 %v250, 7
    %v252 = vsub.s32 1, %v251
    %v253 = vrot.slane %v244, %v252
    %v256 = vadd.f32 %v240, %v249
    %v257 = vadd.f32 %v242, %v253
    %v258 = vtanh.pop %v256
    %v259 = vtanh.pop %v257
    %v260 = vld [vmem:[#allocation7] sm:$0xff]
    %v261 = vld [vmem:[#allocation7 + $0x8] sm:$0xff]
    %v262 = vld [vmem:[#allocation7 + $0x10] sm:$0xff]
    %v263 = vld [vmem:[#allocation7 + $0x18] sm:$0xff]
    %v264 = vld [vmem:[#allocation7 + $0x20] sm:$0xff]
    %v265 = vld [vmem:[#allocation7 + $0x28] sm:$0xff]
    %v266 = vld [vmem:[#allocation7 + $0x30] sm:$0xff]
    %v267 = vld [vmem:[#allocation7 + $0x38] sm:$0xff]
    %v268 = vld [vmem:[#allocation7 + $0x40] sm:$0xff]
    %v269 = vld [vmem:[#allocation7 + $0x48] sm:$0xff]
    %v270 = vld [vmem:[#allocation7 + $0x50] sm:$0xff]
    %v271 = vld [vmem:[#allocation7 + $0x58] sm:$0xff]
    %v272 = vld [vmem:[#allocation7 + $0x60] sm:$0xff]
    %v273 = vld [vmem:[#allocation7 + $0x68] sm:$0xff]
    %v274 = vld [vmem:[#allocation7 + $0x70] sm:$0xff]
    %v275 = vld [vmem:[#allocation7 + $0x78] sm:$0xff]
    %v276 = vld [vmem:[#allocation7 + $0x80] sm:$0xff]
    %v277 = vld [vmem:[#allocation7 + $0x88] sm:$0xff]
    %v278 = vld [vmem:[#allocation7 + $0x90] sm:$0xff]
    %v279 = vld [vmem:[#allocation7 + $0x98] sm:$0xff]
    %v280 = vld [vmem:[#allocation7 + $0xa0] sm:$0xff]
    %v281 = vld [vmem:[#allocation7 + $0xa8] sm:$0xff]
    %v282 = vld [vmem:[#allocation7 + $0xb0] sm:$0xff]
    %v283 = vld [vmem:[#allocation7 + $0xb8] sm:$0xff]
    %v284 = vld [vmem:[#allocation7 + $0xc0] sm:$0xff]
    %v285 = vld [vmem:[#allocation7 + $0xc8] sm:$0xff]
    %v286 = vld [vmem:[#allocation7 + $0xd0] sm:$0xff]
    %v287 = vld [vmem:[#allocation7 + $0xd8] sm:$0xff]
    %v288 = vld [vmem:[#allocation7 + $0xe0] sm:$0xff]
    %v289 = vld [vmem:[#allocation7 + $0xe8] sm:$0xff]
    %v290 = vld [vmem:[#allocation7 + $0xf0] sm:$0xff]
    %v291 = vld [vmem:[#allocation7 + $0xf8] sm:$0xff]
    %v292 = vld [vmem:[#allocation7 + $0x100] sm:$0xff]
    %v293 = vld [vmem:[#allocation7 + $0x108] sm:$0xff]
    %v294 = vld [vmem:[#allocation7 + $0x110] sm:$0xff]
    %v295 = vld [vmem:[#allocation7 + $0x118] sm:$0xff]
    %v296 = vld [vmem:[#allocation7 + $0x120] sm:$0xff]
    %v297 = vld [vmem:[#allocation7 + $0x128] sm:$0xff]
    %v298 = vld [vmem:[#allocation7 + $0x130] sm:$0xff]
    %v299 = vld [vmem:[#allocation7 + $0x138] sm:$0xff]
    %v300 = vld [vmem:[#allocation7 + $0x140] sm:$0xff]
    %v301 = vld [vmem:[#allocation7 + $0x148] sm:$0xff]
    %v302 = vld [vmem:[#allocation7 + $0x150] sm:$0xff]
    %v303 = vld [vmem:[#allocation7 + $0x158] sm:$0xff]
    %v304 = vld [vmem:[#allocation7 + $0x160] sm:$0xff]
    %v305 = vld [vmem:[#allocation7 + $0x168] sm:$0xff]
    %v306 = vld [vmem:[#allocation7 + $0x170] sm:$0xff]
    %v307 = vld [vmem:[#allocation7 + $0x178] sm:$0xff]
    %v308 = vld [vmem:[#allocation7 + $0x180] sm:$0xff]
    %v309 = vld [vmem:[#allocation7 + $0x188] sm:$0xff]
    %v310 = vld [vmem:[#allocation7 + $0x190] sm:$0xff]
    %v311 = vld [vmem:[#allocation7 + $0x198] sm:$0xff]
    %v312 = vld [vmem:[#allocation7 + $0x1a0] sm:$0xff]
    %v313 = vld [vmem:[#allocation7 + $0x1a8] sm:$0xff]
    %v314 = vld [vmem:[#allocation7 + $0x1b0] sm:$0xff]
    %v315 = vld [vmem:[#allocation7 + $0x1b8] sm:$0xff]
    %v316 = vld [vmem:[#allocation7 + $0x1c0] sm:$0xff]
    %v317 = vld [vmem:[#allocation7 + $0x1c8] sm:$0xff]
    %v318 = vld [vmem:[#allocation7 + $0x1d0] sm:$0xff]
    %v319 = vld [vmem:[#allocation7 + $0x1d8] sm:$0xff]
    %v320 = vld [vmem:[#allocation7 + $0x1e0] sm:$0xff]
    %v321 = vld [vmem:[#allocation7 + $0x1e8] sm:$0xff]
    %v322 = vld [vmem:[#allocation7 + $0x1f0] sm:$0xff]
    %v323 = vld [vmem:[#allocation7 + $0x1f8] sm:$0xff]
    %v324 = vld [vmem:[#allocation8] sm:$0x3]
    %v326 = vlaneseq
    %v327 = vshrl.u32 %v326, 7
    %v328 = vsub.s32 0, %v327
    %v329 = vrot.slane %v324, %v328
    %v330 = vlaneseq
    %v331 = vshrl.u32 %v330, 7
    %v332 = vsub.s32 1, %v331
    %v333 = vrot.slane %v324, %v332
    %336 = vmatprep.subr.mxu0 %v261
    %337 = vmatpush1.msra.mxu0 %v260
    %338 = vmatprep.subr.mxu0 %v263
    %339 = vmatpush1.msra.mxu0 %v262
    %340 = vmatprep.subr.mxu0 %v265
    %341 = vmatpush1.msra.mxu0 %v264
    %342 = vmatprep.subr.mxu0 %v267
    %343 = vmatpush1.msra.mxu0 %v266
    %344 = vmatprep.subr.mxu0 %v269
    %345 = vmatpush1.msra.mxu0 %v268
    %346 = vmatprep.subr.mxu0 %v271
    %347 = vmatpush1.msra.mxu0 %v270
    %348 = vmatprep.subr.mxu0 %v273
    %349 = vmatpush1.msra.mxu0 %v272
    %350 = vmatprep.subr.mxu0 %v275
    %351 = vmatpush1.msra.mxu0 %v274
    %352 = vmatprep.subr.mxu0 %v277
    %353 = vmatpush1.msra.mxu0 %v276
    %354 = vmatprep.subr.mxu0 %v279
    %355 = vmatpush1.msra.mxu0 %v278
    %356 = vmatprep.subr.mxu0 %v281
    %357 = vmatpush1.msra.mxu0 %v280
    %358 = vmatprep.subr.mxu0 %v283
    %359 = vmatpush1.msra.mxu0 %v282
    %360 = vmatprep.subr.mxu0 %v285
    %361 = vmatpush1.msra.mxu0 %v284
    %362 = vmatprep.subr.mxu0 %v287
    %363 = vmatpush1.msra.mxu0 %v286
    %364 = vmatprep.subr.mxu0 %v289
    %365 = vmatpush1.msra.mxu0 %v288
    %366 = vmatprep.subr.mxu0 %v291
    %367 = vmatpush1.msra.mxu0 %v290
    %368 = vmatprep.subr.mxu0 %v293
    %369 = vmatpush1.msra.mxu0 %v292
    %370 = vmatprep.subr.mxu0 %v295
    %371 = vmatpush1.msra.mxu0 %v294
    %372 = vmatprep.subr.mxu0 %v297
    %373 = vmatpush1.msra.mxu0 %v296
    %374 = vmatprep.subr.mxu0 %v299
    %375 = vmatpush1.msra.mxu0 %v298
    %376 = vmatprep.subr.mxu0 %v301
    %377 = vmatpush1.msra.mxu0 %v300
    %378 = vmatprep.subr.mxu0 %v303
    %379 = vmatpush1.msra.mxu0 %v302
    %380 = vmatprep.subr.mxu0 %v305
    %381 = vmatpush1.msra.mxu0 %v304
    %382 = vmatprep.subr.mxu0 %v307
    %383 = vmatpush1.msra.mxu0 %v306
    %384 = vmatprep.subr.mxu0 %v309
    %385 = vmatpush1.msra.mxu0 %v308
    %386 = vmatprep.subr.mxu0 %v311
    %387 = vmatpush1.msra.mxu0 %v310
    %388 = vmatprep.subr.mxu0 %v313
    %389 = vmatpush1.msra.mxu0 %v312
    %390 = vmatprep.subr.mxu0 %v315
    %391 = vmatpush1.msra.mxu0 %v314
    %392 = vmatprep.subr.mxu0 %v317
    %393 = vmatpush1.msra.mxu0 %v316
    %394 = vmatprep.subr.mxu0 %v319
    %395 = vmatpush1.msra.mxu0 %v318
    %396 = vmatprep.subr.mxu0 %v321
    %397 = vmatpush1.msra.mxu0 %v320
    %398 = vmatprep.subr.mxu0 %v323
    %399 = vmatpush1.msra.mxu0 %v322
    %400 = vmatprep.mubr.f32.mxu0 %v259
    %401 = vmatmul.mubr.f32.gmra.mrb[0].mxu0 %v258
    %v402 = vpop.f32.mrb[0].mxu0
    %v403 = vadd.f32 %v329, %v402
    %v404 = vpop.f32.mrb[0].mxu0
    %v405 = vadd.f32 %v333, %v404
    %406 = vdwg.mxu0
    %v407 = vmul.f32 %v403, 1.442695
    %v408 = vpow.pop %v407
    %v409 = vmul.f32 %v82, %v408
    %v410 = vadd.f32 %v409, %v405
    %v411 = vld [vmem:[%s7] sm:$0xff]
    %v412 = vld [vmem:[%s8] sm:$0xff]
    %v414 = vsel %vm169, %v403, 0
    %416 = vmatprep.subr.mxu0 0.0
    %417 = vmatpush1.msra.mxu0 %v412
    %418 = vmatprep.subr.mxu0 0.0
    %419 = vmatpush1.msra.mxu0 0.0
    %420 = vmatprep.subr.mxu0 0.0
    %421 = vmatpush1.msra.mxu0 0.0
    %422 = vmatprep.subr.mxu0 0.0
    %423 = vmatpush1.msra.mxu0 0.0
    %424 = vmatprep.subr.mxu0 0.0
    %425 = vmatpush1.msra.mxu0 0.0
    %426 = vmatprep.subr.mxu0 0.0
    %427 = vmatpush1.msra.mxu0 0.0
    %428 = vmatprep.subr.mxu0 0.0
    %429 = vmatpush1.msra.mxu0 0.0
    %430 = vmatprep.subr.mxu0 0.0
    %431 = vmatpush1.msra.mxu0 0.0
    %432 = vmatprep.subr.mxu0 0.0
    %433 = vmatpush1.msra.mxu0 0.0
    %434 = vmatprep.subr.mxu0 0.0
    %435 = vmatpush1.msra.mxu0 0.0
    %436 = vmatprep.subr.mxu0 0.0
    %437 = vmatpush1.msra.mxu0 0.0
    %438 = vmatprep.subr.mxu0 0.0
    %439 = vmatpush1.msra.mxu0 0.0
    %440 = vmatprep.subr.mxu0 0.0
    %441 = vmatpush1.msra.mxu0 0.0
    %442 = vmatprep.subr.mxu0 0.0
    %443 = vmatpush1.msra.mxu0 0.0
    %444 = vmatprep.subr.mxu0 0.0
    %445 = vmatpush1.msra.mxu0 0.0
    %446 = vmatprep.subr.mxu0 0.0
    %447 = vmatpush1.msra.mxu0 0.0
    %448 = vmatprep.subr.mxu0 0.0
    %449 = vmatpush1.msra.mxu0 0.0
    %450 = vmatprep.subr.mxu0 0.0
    %451 = vmatpush1.msra.mxu0 0.0
    %452 = vmatprep.subr.mxu0 0.0
    %453 = vmatpush1.msra.mxu0 0.0
    %454 = vmatprep.subr.mxu0 0.0
    %455 = vmatpush1.msra.mxu0 0.0
    %456 = vmatprep.subr.mxu0 0.0
    %457 = vmatpush1.msra.mxu0 0.0
    %458 = vmatprep.subr.mxu0 0.0
    %459 = vmatpush1.msra.mxu0 0.0
    %460 = vmatprep.subr.mxu0 0.0
    %461 = vmatpush1.msra.mxu0 0.0
    %462 = vmatprep.subr.mxu0 0.0
    %463 = vmatpush1.msra.mxu0 0.0
    %464 = vmatprep.subr.mxu0 0.0
    %465 = vmatpush1.msra.mxu0 0.0
    %466 = vmatprep.subr.mxu0 0.0
    %467 = vmatpush1.msra.mxu0 0.0
    %468 = vmatprep.subr.mxu0 0.0
    %469 = vmatpush1.msra.mxu0 0.0
    %470 = vmatprep.subr.mxu0 0.0
    %471 = vmatpush1.msra.mxu0 0.0
    %472 = vmatprep.subr.mxu0 0.0
    %473 = vmatpush1.msra.mxu0 0.0
    %474 = vmatprep.subr.mxu0 0.0
    %475 = vmatpush1.msra.mxu0 0.0
    %476 = vmatprep.subr.mxu0 0.0
    %477 = vmatpush1.msra.mxu0 0.0
    %478 = vmatprep.subr.mxu0 0.0
    %479 = vmatpush1.msra.mxu0 0.0
    %480 = vmatprep.mubr.f32.mxu0 0.0
    %481 = vmatmul.mubr.f32.gmra.mrb[0].mxu0 %v414
    %v482 = vpop.f32.mrb[0].mxu0
    %v483 = vadd.f32 0.0, %v482
    %v484 = vpop.f32.mrb[0].mxu0
    %485 = vdwg.mxu0
    %v487 = vsel %vm169, %v410, 0
    %489 = vmatprep.subr.mxu0 0.0
    %490 = vmatpush1.msra.mxu0 %v411
    %491 = vmatprep.subr.mxu0 0.0
    %492 = vmatpush1.msra.mxu0 0.0
    %493 = vmatprep.subr.mxu0 0.0
    %494 = vmatpush1.msra.mxu0 0.0
    %495 = vmatprep.subr.mxu0 0.0
    %496 = vmatpush1.msra.mxu0 0.0
    %497 = vmatprep.subr.mxu0 0.0
    %498 = vmatpush1.msra.mxu0 0.0
    %499 = vmatprep.subr.mxu0 0.0
    %500 = vmatpush1.msra.mxu0 0.0
    %501 = vmatprep.subr.mxu0 0.0
    %502 = vmatpush1.msra.mxu0 0.0
    %503 = vmatprep.subr.mxu0 0.0
    %504 = vmatpush1.msra.mxu0 0.0
    %505 = vmatprep.subr.mxu0 0.0
    %506 = vmatpush1.msra.mxu0 0.0
    %507 = vmatprep.subr.mxu0 0.0
    %508 = vmatpush1.msra.mxu0 0.0
    %509 = vmatprep.subr.mxu0 0.0
    %510 = vmatpush1.msra.mxu0 0.0
    %511 = vmatprep.subr.mxu0 0.0
    %512 = vmatpush1.msra.mxu0 0.0
    %513 = vmatprep.subr.mxu0 0.0
    %514 = vmatpush1.msra.mxu0 0.0
    %515 = vmatprep.subr.mxu0 0.0
    %516 = vmatpush1.msra.mxu0 0.0
    %517 = vmatprep.subr.mxu0 0.0
    %518 = vmatpush1.msra.mxu0 0.0
    %519 = vmatprep.subr.mxu0 0.0
    %520 = vmatpush1.msra.mxu0 0.0
    %521 = vmatprep.subr.mxu0 0.0
    %522 = vmatpush1.msra.mxu0 0.0
    %523 = vmatprep.subr.mxu0 0.0
    %524 = vmatpush1.msra.mxu0 0.0
    %525 = vmatprep.subr.mxu0 0.0
    %526 = vmatpush1.msra.mxu0 0.0
    %527 = vmatprep.subr.mxu0 0.0
    %528 = vmatpush1.msra.mxu0 0.0
    %529 = vmatprep.subr.mxu0 0.0
    %530 = vmatpush1.msra.mxu0 0.0
    %531 = vmatprep.subr.mxu0 0.0
    %532 = vmatpush1.msra.mxu0 0.0
    %533 = vmatprep.subr.mxu0 0.0
    %534 = vmatpush1.msra.mxu0 0.0
    %535 = vmatprep.subr.mxu0 0.0
    %536 = vmatpush1.msra.mxu0 0.0
    %537 = vmatprep.subr.mxu0 0.0
    %538 = vmatpush1.msra.mxu0 0.0
    %539 = vmatprep.subr.mxu0 0.0
    %540 = vmatpush1.msra.mxu0 0.0
    %541 = vmatprep.subr.mxu0 0.0
    %542 = vmatpush1.msra.mxu0 0.0
    %543 = vmatprep.subr.mxu0 0.0
    %544 = vmatpush1.msra.mxu0 0.0
    %545 = vmatprep.subr.mxu0 0.0
    %546 = vmatpush1.msra.mxu0 0.0
    %547 = vmatprep.subr.mxu0 0.0
    %548 = vmatpush1.msra.mxu0 0.0
    %549 = vmatprep.subr.mxu0 0.0
    %550 = vmatpush1.msra.mxu0 0.0
    %551 = vmatprep.subr.mxu0 0.0
    %552 = vmatpush1.msra.mxu0 0.0
    %553 = vmatprep.mubr.f32.mxu0 0.0
    %554 = vmatmul.mubr.f32.gmra.mrb[0].mxu0 %v487
    %v555 = vpop.f32.mrb[0].mxu0
    %v556 = vadd.f32 %v483, %v555
    %v557 = vpop.f32.mrb[0].mxu0
    %558 = vdwg.mxu0
    %559 = vst [vmem:[#allocation10] sm:$0xff] %v556
    // Predicated region
    $region54: #{tpu_custom_call.1} parent=1 // pred_check
      _
    $region55: #{tpu_custom_call.1} parent=1 // pred_check_branch
      %561 = sbr.rel (0) target = $region57
    $region56: #{tpu_custom_call.1} parent=1 // pred_region
      %s563 = ssub.s32 128, 128
      %564 = vsyncadd [#allocation4], %s563
      %s566 = sshll.u32 [#allocation10], 4
      %s567 = int_to_ptr.vmem [resolvable:$true] %s566
      %569 = dma.vmem_to_hbm [thread:$0]  %s567, 128, %s9, [#allocation4]
    $region57: #{tpu_custom_call.1} parent=1 // pred_fallthru
      _
    // Predicated region
    $region58: #{tpu_custom_call.1} parent=1 // pred_check
      _
    $region59: #{tpu_custom_call.1} parent=1 // pred_check_branch
      %571 = sbr.rel (0) target = $region61
    $region60: #{tpu_custom_call.1} parent=1 // pred_region
      %572 = dma.done [#allocation4], 128
    $region61: #{tpu_custom_call.1} parent=1 // pred_fallthru
      _
    %573 = vsyncpa [#allocation3], 1
    %574 = vsyncpa [#allocation6], 1
    %575 = vsyncpa [#allocation9], 1
    %576 = vsyncpa [#allocation4], 1

</llo_original>
